<compile_context>
chip_gen: v7x
topology: tpu7x:2x2x1
jax: 0.10.0
libtpu: 0.0.40
codegen_flags: <defaults>
</compile_context>

<pallas_src>
import functools

import jax
import jax.numpy as jnp
from jax.experimental import pallas as pl
from jax.experimental.pallas import tpu as pltpu


def _round_up(x, m):
    return ((x + m - 1) // m) * m


# --------------------------------------------------------------------------- #
# Kernels
# --------------------------------------------------------------------------- #
def _linear_kernel(x_ref, w_ref, scale_ref, o_ref):
    # o[row_tile] = scale[row_tile] * (X[row_tile] @ W)     -> [tm, O_pad]
    y = jnp.dot(x_ref[...], w_ref[...], preferred_element_type=jnp.float32)
    o_ref[...] = scale_ref[...] * y


def _prop_kernel(a_ref, z_ref, scale_ref, b_ref, o_ref, *, add_bias: bool):
    # o[row_tile] = scale[row_tile] * (A_hat[row_tile, :] @ z)  (+ b on last step)
    a = a_ref[...].astype(jnp.float32)        # bf16 0/1/2 entries -> exact upcast
    y = jnp.dot(a, z_ref[...], preferred_element_type=jnp.float32)
    y = scale_ref[...] * y
    if add_bias:
        y = y + b_ref[...]
    o_ref[...] = y


# --------------------------------------------------------------------------- #
# Forward
# --------------------------------------------------------------------------- #
@functools.partial(jax.jit, static_argnames=("K", "row_tile"))
def sgc_2_paper_forward(V, E, X, W, b, *, K: int = 3, row_tile=None):
    """Pallas forward of SGC_2_Paper.

    V: [N] node ids (only length used)
    E: [2, M] int edge index
    X: [N, F] node features
    W: [F, O] weight (transposed vs. nn.Linear), b: [1, O] bias
    """
    assert K >= 1
    N = int(V.shape[0])
    F = int(X.shape[1])
    O = int(W.shape[1])

    # ---- XLA glue: dense adjacency with self-loops (matches reference) ----
    A = jnp.zeros((N, N), dtype=jnp.float32)
    A = A.at[E[0], E[1]].set(1.0)
    A = A.at[E[1], E[0]].set(1.0)
    A_hat = A + jnp.eye(N, dtype=jnp.float32)

    deg = A_hat.sum(axis=1, keepdims=True)              # [N, 1], >= 1
    dinv = jax.lax.rsqrt(deg)                            # D^{-1/2}
    dinv2 = 1.0 / deg                                    # D^{-1}

    # ---- padding: lane-dense output (O -> 128), A rows/cols -> multiple of 128 ----
    n_pad = _round_up(max(N, 8), 128)
    o_pad = _round_up(max(O, 1), 128)

    a_p = jnp.zeros((n_pad, n_pad), jnp.bfloat16).at[:N, :N].set(
        A_hat.astype(jnp.bfloat16))
    x_p = jnp.zeros((n_pad, F), jnp.float32).at[:N, :].set(X.astype(jnp.float32))
    w_p = jnp.zeros((F, o_pad), jnp.float32).at[:, :O].set(W.astype(jnp.float32))
    b_p = jnp.zeros((1, o_pad), jnp.float32).at[:, :O].set(
        b.reshape(1, O).astype(jnp.float32))
    dinv_p = jnp.ones((n_pad, 1), jnp.float32).at[:N, :].set(dinv)
    dinv2_p = jnp.ones((n_pad, 1), jnp.float32).at[:N, :].set(dinv2)

    # ---- row-tile choice (multiple of 128, divides n_pad) ----
    if row_tile is None:
        row_tile = 256 if (n_pad % 256 == 0) else 128
    tm = min(int(row_tile), n_pad)
    assert n_pad % tm == 0, (n_pad, tm)
    grid = (n_pad // tm,)

    # ---- VMEM budget (double-buffered A tile + resident z + f32 upcast + out) ----
    prop_bytes = 2 * (tm * n_pad * 2          # bf16 A tile, double-buffered
                      + tm * n_pad * 4        # in-kernel f32 upcast of A tile
                      + n_pad * o_pad * 4     # resident feature matrix z
                      + tm * o_pad * 4        # output tile
                      + tm * 4 + o_pad * 4)   # scale + bias
    vmem_limit = int(min(max(prop_bytes + (2 << 20), 8 << 20), 96 << 20))
    compiler_params = pltpu.CompilerParams(
        dimension_semantics=("parallel",),
        vmem_limit_bytes=vmem_limit,
    )

    lin_cost = pl.CostEstimate(
        flops=2 * n_pad * F * o_pad,
        transcendentals=0,
        bytes_accessed=n_pad * F * 4 + F * o_pad * 4 + n_pad * o_pad * 4 + n_pad * 4,
    )
    prop_cost = pl.CostEstimate(
        flops=2 * n_pad * n_pad * o_pad,
        transcendentals=0,
        bytes_accessed=n_pad * n_pad * 2 + 2 * n_pad * o_pad * 4
        + n_pad * 4 + o_pad * 4,
    )

    # ---- z0 = D^{-1/2} (X W)  (linear first: far fewer propagation FLOPs) ----
    z = pl.pallas_call(
        _linear_kernel,
        out_shape=jax.ShapeDtypeStruct((n_pad, o_pad), jnp.float32),
        grid=grid,
        in_specs=[
            pl.BlockSpec((tm, F), lambda i: (i, 0)),
            pl.BlockSpec((F, o_pad), lambda i: (0, 0)),
            pl.BlockSpec((tm, 1), lambda i: (i, 0)),
        ],
        out_specs=pl.BlockSpec((tm, o_pad), lambda i: (i, 0)),
        compiler_params=compiler_params,
        cost_estimate=lin_cost,
    )(x_p, w_p, dinv_p)

    # ---- K propagation steps, row-tiled over A ----
    for k in range(K):
        last = (k == K - 1)
        scale = dinv_p if last else dinv2_p
        z = pl.pallas_call(
            functools.partial(_prop_kernel, add_bias=last),
            out_shape=jax.ShapeDtypeStruct((n_pad, o_pad), jnp.float32),
            grid=grid,
            in_specs=[
                pl.BlockSpec((tm, n_pad), lambda i: (i, 0)),     # A row tile (streamed)
                pl.BlockSpec((n_pad, o_pad), lambda i: (0, 0)),  # z (resident)
                pl.BlockSpec((tm, 1), lambda i: (i, 0)),         # per-row scale
                pl.BlockSpec((1, o_pad), lambda i: (0, 0)),      # bias
            ],
            out_specs=pl.BlockSpec((tm, o_pad), lambda i: (i, 0)),
            compiler_params=compiler_params,
            cost_estimate=prop_cost,
        )(a_p, z, scale, b_p)

    return z[:N, :O]


# --------------------------------------------------------------------------- #
# Pure-JAX reference
# --------------------------------------------------------------------------- #
def _reference(V, E, X, W, b, K=3):
    N = int(V.shape[0])
    A = jnp.zeros((N, N), dtype=jnp.float32)
    A = A.at[E[0], E[1]].set(1.0)
    A = A.at[E[1], E[0]].set(1.0)
    A_hat = A + jnp.eye(N, dtype=jnp.float32)
    deg = A_hat.sum(axis=1, keepdims=True)
    dinv = 1.0 / jnp.sqrt(deg)
    S = dinv * A_hat * dinv.T
    H = X
    for _ in range(K):
        H = S @ H
    return H @ W + b


if __name__ == "__main__":
    key = jax.random.PRNGKey(0)
    k_x, k_e, k_w, k_b, k_x2, k_e2 = jax.random.split(key, 6)

    # --- Test 1: small graph matching the module's intent (N=16, F=32, O=8, K=3) ---
    N, F, O, K = 16, 32, 8, 3
    num_edges = 40
    V = jnp.arange(N, dtype=jnp.int32)
    E = jax.random.randint(k_e, (2, num_edges), 0, N, dtype=jnp.int32)
    X = jax.random.normal(k_x, (N, F), dtype=jnp.float32)
    W = jax.random.normal(k_w, (F, O), dtype=jnp.float32) * (1.0 / (F ** 0.5))
    b = jax.random.normal(k_b, (1, O), dtype=jnp.float32) * 0.01

    H = sgc_2_paper_forward(V, E, X, W, b, K=K)
    jax.block_until_ready(H)
    H_ref = _reference(V, E, X, W, b, K=K)
    assert H.shape == (N, O)
    assert jnp.allclose(H, H_ref, atol=1e-4, rtol=1e-4), float(
        jnp.max(jnp.abs(H - H_ref)))

    # --- Test 2: larger graph exercising the multi-tile grid (N_pad=256, tm=128) ---
    N2, M2, K2 = 200, 600, 2
    V2 = jnp.arange(N2, dtype=jnp.int32)
    E2 = jax.random.randint(k_e2, (2, M2), 0, N2, dtype=jnp.int32)
    X2 = jax.random.normal(k_x2, (N2, F), dtype=jnp.float32)
    H2 = sgc_2_paper_forward(V2, E2, X2, W, b, K=K2, row_tile=128)
    jax.block_until_ready(H2)
    H2_ref = _reference(V2, E2, X2, W, b, K=K2)
    assert H2.shape == (N2, O)
    assert jnp.allclose(H2, H2_ref, atol=1e-4, rtol=1e-4), float(
        jnp.max(jnp.abs(H2 - H2_ref)))

    print("KERNEL_OK")
</pallas_src>

<mosaic_0001>
module attributes {stable_mosaic.version = 11 : i64} {
  func.func @_prop_kernel(%arg0: i32, %arg1: memref<128x128xbf16, #tpu.memory_space<vmem>>, %arg2: memref<128x128xf32, #tpu.memory_space<vmem>>, %arg3: memref<128x1xf32, #tpu.memory_space<vmem>>, %arg4: memref<1x128xf32, #tpu.memory_space<vmem>>, %arg5: memref<128x128xf32, #tpu.memory_space<vmem>>) attributes {dimension_semantics = [#tpu.dimension_semantics<parallel>], iteration_bounds = array<i64: 1>, scalar_prefetch = 0 : i64, scratch_operands = 0 : i64, tpu.core_type = #tpu.core_type<tc>, window_params = [{transform_indices = @transform_0, window_bounds = array<i64: 128, 128>}, {pipeline_mode = #tpu.pipeline_mode<synchronous>, transform_indices = @transform_1, window_bounds = array<i64: 128, 128>}, {transform_indices = @transform_2, window_bounds = array<i64: 128, 1>}, {pipeline_mode = #tpu.pipeline_mode<synchronous>, transform_indices = @transform_3, window_bounds = array<i64: 1, 128>}, {transform_indices = @transform_4, window_bounds = array<i64: 128, 128>}]} {
    %c0 = arith.constant 0 : index
    %c0_0 = arith.constant 0 : index
    %0 = vector.load %arg1[%c0, %c0_0] : memref<128x128xbf16, #tpu.memory_space<vmem>>, vector<128x128xbf16>
    %1 = arith.extf %0 : vector<128x128xbf16> to vector<128x128xf32>
    %c0_1 = arith.constant 0 : index
    %c0_2 = arith.constant 0 : index
    %2 = vector.load %arg2[%c0_1, %c0_2] : memref<128x128xf32, #tpu.memory_space<vmem>>, vector<128x128xf32>
    %cst = arith.constant dense<0.000000e+00> : vector<128x128xf32>
    %3 = tpu.matmul %1, %2, %cst {dimension_numbers = #tpu.dot_dimension_numbers<[1], [0], [0], [1], [0, 0, 1, 1], [], []>} : vector<128x128xf32>, vector<128x128xf32>, vector<128x128xf32> -> vector<128x128xf32>
    %c0_3 = arith.constant 0 : index
    %c0_4 = arith.constant 0 : index
    %4 = vector.load %arg3[%c0_3, %c0_4] : memref<128x1xf32, #tpu.memory_space<vmem>>, vector<128x1xf32>
    %5 = vector.broadcast %4 : vector<128x1xf32> to vector<128x128xf32>
    %6 = arith.mulf %5, %3 : vector<128x128xf32>
    %c0_5 = arith.constant 0 : index
    %c0_6 = arith.constant 0 : index
    %7 = vector.load %arg4[%c0_5, %c0_6] : memref<1x128xf32, #tpu.memory_space<vmem>>, vector<1x128xf32>
    %8 = vector.broadcast %7 : vector<1x128xf32> to vector<128x128xf32>
    %9 = arith.addf %6, %8 : vector<128x128xf32>
    %c0_7 = arith.constant 0 : index
    %c0_8 = arith.constant 0 : index
    %10 = vector.load %arg5[%c0_7, %c0_8] : memref<128x128xf32, #tpu.memory_space<vmem>>, vector<128x128xf32>
    tpu.vector_store %arg5[%c0_7, %c0_8], %9 {strides = array<i32>} : memref<128x128xf32, #tpu.memory_space<vmem>>, vector<128x128xf32>,
    return
  }
  func.func @transform_0(%arg0: i32) -> (i32, i32) {
    %c0_i32 = arith.constant 0 : i32
    %c0_i32_0 = arith.constant 0 : i32
    return %arg0, %c0_i32 : i32, i32
  }
  func.func @transform_1(%arg0: i32) -> (i32, i32) {
    %c0_i32 = arith.constant 0 : i32
    %c0_i32_0 = arith.constant 0 : i32
    %c0_i32_1 = arith.constant 0 : i32
    return %c0_i32, %c0_i32_0 : i32, i32
  }
  func.func @transform_2(%arg0: i32) -> (i32, i32) {
    %c0_i32 = arith.constant 0 : i32
    %c0_i32_0 = arith.constant 0 : i32
    return %arg0, %c0_i32 : i32, i32
  }
  func.func @transform_3(%arg0: i32) -> (i32, i32) {
    %c0_i32 = arith.constant 0 : i32
    %c0_i32_0 = arith.constant 0 : i32
    %c0_i32_1 = arith.constant 0 : i32
    return %c0_i32, %c0_i32_0 : i32, i32
  }
  func.func @transform_4(%arg0: i32) -> (i32, i32) {
    %c0_i32 = arith.constant 0 : i32
    %c0_i32_0 = arith.constant 0 : i32
    return %arg0, %c0_i32 : i32, i32
  }
}

module attributes {stable_mosaic.version = 11 : i64} {
  func.func @_prop_kernel(%arg0: i32, %arg1: memref<128x128xbf16, #tpu.memory_space<vmem>>, %arg2: memref<128x128xf32, #tpu.memory_space<vmem>>, %arg3: memref<128x1xf32, #tpu.memory_space<vmem>>, %arg4: memref<1x128xf32, #tpu.memory_space<vmem>>, %arg5: memref<128x128xf32, #tpu.memory_space<vmem>>) attributes {dimension_semantics = [#tpu.dimension_semantics<parallel>], iteration_bounds = array<i64: 1>, scalar_prefetch = 0 : i64, scratch_operands = 0 : i64, tpu.core_type = #tpu.core_type<tc>, window_params = [{transform_indices = @transform_0, window_bounds = array<i64: 128, 128>}, {pipeline_mode = #tpu.pipeline_mode<synchronous>, transform_indices = @transform_1, window_bounds = array<i64: 128, 128>}, {transform_indices = @transform_2, window_bounds = array<i64: 128, 1>}, {pipeline_mode = #tpu.pipeline_mode<synchronous>, transform_indices = @transform_3, window_bounds = array<i64: 1, 128>}, {transform_indices = @transform_4, window_bounds = array<i64: 128, 128>}]} {
    %c0 = arith.constant 0 : index
    %c0_0 = arith.constant 0 : index
    %0 = vector.load %arg1[%c0, %c0_0] : memref<128x128xbf16, #tpu.memory_space<vmem>>, vector<128x128xbf16>
    %1 = arith.extf %0 : vector<128x128xbf16> to vector<128x128xf32>
    %c0_1 = arith.constant 0 : index
    %c0_2 = arith.constant 0 : index
    %2 = vector.load %arg2[%c0_1, %c0_2] : memref<128x128xf32, #tpu.memory_space<vmem>>, vector<128x128xf32>
    %cst = arith.constant dense<0.000000e+00> : vector<128x128xf32>
    %3 = tpu.matmul %1, %2, %cst {dimension_numbers = #tpu.dot_dimension_numbers<[1], [0], [0], [1], [0, 0, 1, 1], [], []>} : vector<128x128xf32>, vector<128x128xf32>, vector<128x128xf32> -> vector<128x128xf32>
    %c0_3 = arith.constant 0 : index
    %c0_4 = arith.constant 0 : index
    %4 = vector.load %arg3[%c0_3, %c0_4] : memref<128x1xf32, #tpu.memory_space<vmem>>, vector<128x1xf32>
    %5 = vector.broadcast %4 : vector<128x1xf32> to vector<128x128xf32>
    %6 = arith.mulf %5, %3 : vector<128x128xf32>
    %c0_5 = arith.constant 0 : index
    %c0_6 = arith.constant 0 : index
    %7 = vector.load %arg5[%c0_5, %c0_6] : memref<128x128xf32, #tpu.memory_space<vmem>>, vector<128x128xf32>
    tpu.vector_store %arg5[%c0_5, %c0_6], %6 {strides = array<i32>} : memref<128x128xf32, #tpu.memory_space<vmem>>, vector<128x128xf32>,
    return
  }
  func.func @transform_0(%arg0: i32) -> (i32, i32) {
    %c0_i32 = arith.constant 0 : i32
    %c0_i32_0 = arith.constant 0 : i32
    return %arg0, %c0_i32 : i32, i32
  }
  func.func @transform_1(%arg0: i32) -> (i32, i32) {
    %c0_i32 = arith.constant 0 : i32
    %c0_i32_0 = arith.constant 0 : i32
    %c0_i32_1 = arith.constant 0 : i32
    return %c0_i32, %c0_i32_0 : i32, i32
  }
  func.func @transform_2(%arg0: i32) -> (i32, i32) {
    %c0_i32 = arith.constant 0 : i32
    %c0_i32_0 = arith.constant 0 : i32
    return %arg0, %c0_i32 : i32, i32
  }
  func.func @transform_3(%arg0: i32) -> (i32, i32) {
    %c0_i32 = arith.constant 0 : i32
    %c0_i32_0 = arith.constant 0 : i32
    %c0_i32_1 = arith.constant 0 : i32
    return %c0_i32, %c0_i32_0 : i32, i32
  }
  func.func @transform_4(%arg0: i32) -> (i32, i32) {
    %c0_i32 = arith.constant 0 : i32
    %c0_i32_0 = arith.constant 0 : i32
    return %arg0, %c0_i32 : i32, i32
  }
}

module attributes {stable_mosaic.version = 11 : i64} {
  func.func @_linear_kernel(%arg0: i32, %arg1: memref<128x32xf32, #tpu.memory_space<vmem>>, %arg2: memref<32x128xf32, #tpu.memory_space<vmem>>, %arg3: memref<128x1xf32, #tpu.memory_space<vmem>>, %arg4: memref<128x128xf32, #tpu.memory_space<vmem>>) attributes {dimension_semantics = [#tpu.dimension_semantics<parallel>], iteration_bounds = array<i64: 1>, scalar_prefetch = 0 : i64, scratch_operands = 0 : i64, tpu.core_type = #tpu.core_type<tc>, window_params = [{transform_indices = @transform_0, window_bounds = array<i64: 128, 32>}, {pipeline_mode = #tpu.pipeline_mode<synchronous>, transform_indices = @transform_1, window_bounds = array<i64: 32, 128>}, {transform_indices = @transform_2, window_bounds = array<i64: 128, 1>}, {transform_indices = @transform_3, window_bounds = array<i64: 128, 128>}]} {
    %c0 = arith.constant 0 : index
    %c0_0 = arith.constant 0 : index
    %0 = vector.load %arg1[%c0, %c0_0] : memref<128x32xf32, #tpu.memory_space<vmem>>, vector<128x32xf32>
    %c0_1 = arith.constant 0 : index
    %c0_2 = arith.constant 0 : index
    %1 = vector.load %arg2[%c0_1, %c0_2] : memref<32x128xf32, #tpu.memory_space<vmem>>, vector<32x128xf32>
    %cst = arith.constant dense<0.000000e+00> : vector<128x128xf32>
    %2 = tpu.matmul %0, %1, %cst {dimension_numbers = #tpu.dot_dimension_numbers<[1], [0], [0], [1], [0, 0, 1, 1], [], []>} : vector<128x32xf32>, vector<32x128xf32>, vector<128x128xf32> -> vector<128x128xf32>
    %c0_3 = arith.constant 0 : index
    %c0_4 = arith.constant 0 : index
    %3 = vector.load %arg3[%c0_3, %c0_4] : memref<128x1xf32, #tpu.memory_space<vmem>>, vector<128x1xf32>
    %4 = vector.broadcast %3 : vector<128x1xf32> to vector<128x128xf32>
    %5 = arith.mulf %4, %2 : vector<128x128xf32>
    %c0_5 = arith.constant 0 : index
    %c0_6 = arith.constant 0 : index
    %6 = vector.load %arg4[%c0_5, %c0_6] : memref<128x128xf32, #tpu.memory_space<vmem>>, vector<128x128xf32>
    tpu.vector_store %arg4[%c0_5, %c0_6], %5 {strides = array<i32>} : memref<128x128xf32, #tpu.memory_space<vmem>>, vector<128x128xf32>,
    return
  }
  func.func @transform_0(%arg0: i32) -> (i32, i32) {
    %c0_i32 = arith.constant 0 : i32
    %c0_i32_0 = arith.constant 0 : i32
    return %arg0, %c0_i32 : i32, i32
  }
  func.func @transform_1(%arg0: i32) -> (i32, i32) {
    %c0_i32 = arith.constant 0 : i32
    %c0_i32_0 = arith.constant 0 : i32
    %c0_i32_1 = arith.constant 0 : i32
    return %c0_i32, %c0_i32_0 : i32, i32
  }
  func.func @transform_2(%arg0: i32) -> (i32, i32) {
    %c0_i32 = arith.constant 0 : i32
    %c0_i32_0 = arith.constant 0 : i32
    return %arg0, %c0_i32 : i32, i32
  }
  func.func @transform_3(%arg0: i32) -> (i32, i32) {
    %c0_i32 = arith.constant 0 : i32
    %c0_i32_0 = arith.constant 0 : i32
    return %arg0, %c0_i32 : i32, i32
  }
}

</mosaic_0001>

<llo_original>
// kernel: sgc_2_paper_forward.7
$region0: #{sgc_2_paper_forward.7}
  #allocation0 [shape = 'u32[]', space=smem, size = 0x4, offset = 0x4, fixed_abs, tag = 'smem constant byte address 0x4 - core index']
  #allocation1 [shape = 'u32[144,128]{1,0:T(1,128)}', space=vmem, size = 0x12000, scoped, tag = 'internal scratch']
  %s0 = inlined_call_operand.vmem [shape: bf16[128,128], index: 0, kind: input, shape index: {}]
  %s1 = inlined_call_operand.vmem [shape: f32[128,128], index: 1, kind: input, shape index: {}]
  %s2 = inlined_call_operand.vmem [shape: f32[128,1], index: 2, kind: input, shape index: {}]
  %s3 = inlined_call_operand.vmem [shape: f32[1,128], index: 3, kind: input, shape index: {}]
  %s4 = inlined_call_operand.vmem [shape: f32[128,128], index: 4, kind: output, shape index: {}]
  %s5 = sld [smem:[#allocation0]]
  $region26: #{sgc_2_paper_forward.7} parent=0
    _
  %s7 = ssub.s32 1, %s5
  %s8 = scalar_select 0, %s7, %s5
  // Predicated region
  $region2: #{sgc_2_paper_forward.7} parent=0 // pred_check
    _
  $region3: #{sgc_2_paper_forward.7} parent=0 // pred_check_branch
    %10 = sbr.rel (0) target = $region5
  $region4: #{sgc_2_paper_forward.7} parent=0 // pred_region
    _
  $region5: #{sgc_2_paper_forward.7} parent=0 // pred_fallthru
    _
  // Predicated region
  $region6: #{sgc_2_paper_forward.7} parent=0 // pred_check
    _
  $region7: #{sgc_2_paper_forward.7} parent=0 // pred_check_branch
    %12 = sbr.rel (0) target = $region9
  $region8: #{sgc_2_paper_forward.7} parent=0 // pred_region
    _
  $region9: #{sgc_2_paper_forward.7} parent=0 // pred_fallthru
    _
  // Predicated region
  $region10: #{sgc_2_paper_forward.7} parent=0 // pred_check
    _
  $region11: #{sgc_2_paper_forward.7} parent=0 // pred_check_branch
    %14 = sbr.rel (0) target = $region13
  $region12: #{sgc_2_paper_forward.7} parent=0 // pred_region
    _
  $region13: #{sgc_2_paper_forward.7} parent=0 // pred_fallthru
    _
  // Predicated region
  $region14: #{sgc_2_paper_forward.7} parent=0 // pred_check
    _
  $region15: #{sgc_2_paper_forward.7} parent=0 // pred_check_branch
    %16 = sbr.rel (0) target = $region17
  $region16: #{sgc_2_paper_forward.7} parent=0 // pred_region
    _
  $region17: #{sgc_2_paper_forward.7} parent=0 // pred_fallthru
    _
  %v17 = vld [vmem:[%s0] sm:$0xf]
  %v18 = vld [vmem:[%s0 + $0x4] sm:$0xf]
  %v19 = vld [vmem:[%s0 + $0x8] sm:$0xf]
  %v20 = vld [vmem:[%s0 + $0xc] sm:$0xf]
  %v21 = vld [vmem:[%s0 + $0x10] sm:$0xf]
  %v22 = vld [vmem:[%s0 + $0x14] sm:$0xf]
  %v23 = vld [vmem:[%s0 + $0x18] sm:$0xf]
  %v24 = vld [vmem:[%s0 + $0x1c] sm:$0xf]
  %v25 = vld [vmem:[%s0 + $0x20] sm:$0xf]
  %v26 = vld [vmem:[%s0 + $0x24] sm:$0xf]
  %v27 = vld [vmem:[%s0 + $0x28] sm:$0xf]
  %v28 = vld [vmem:[%s0 + $0x2c] sm:$0xf]
  %v29 = vld [vmem:[%s0 + $0x30] sm:$0xf]
  %v30 = vld [vmem:[%s0 + $0x34] sm:$0xf]
  %v31 = vld [vmem:[%s0 + $0x38] sm:$0xf]
  %v32 = vld [vmem:[%s0 + $0x3c] sm:$0xf]
  %v33 = vunpack.c.l.bf16 %v17
  %v34 = vunpack.c.l.bf16 %v18
  %v35 = vunpack.c.l.bf16 %v19
  %v36 = vunpack.c.l.bf16 %v20
  %v37 = vunpack.c.l.bf16 %v21
  %v38 = vunpack.c.l.bf16 %v22
  %v39 = vunpack.c.l.bf16 %v23
  %v40 = vunpack.c.l.bf16 %v24
  %v41 = vunpack.c.l.bf16 %v25
  %v42 = vunpack.c.l.bf16 %v26
  %v43 = vunpack.c.l.bf16 %v27
  %v44 = vunpack.c.l.bf16 %v28
  %v45 = vunpack.c.l.bf16 %v29
  %v46 = vunpack.c.l.bf16 %v30
  %v47 = vunpack.c.l.bf16 %v31
  %v48 = vunpack.c.l.bf16 %v32
  %v49 = vld [vmem:[%s1] sm:$0xff]
  %v50 = vld [vmem:[%s1 + $0x8] sm:$0xff]
  %v51 = vld [vmem:[%s1 + $0x10] sm:$0xff]
  %v52 = vld [vmem:[%s1 + $0x18] sm:$0xff]
  %v53 = vld [vmem:[%s1 + $0x20] sm:$0xff]
  %v54 = vld [vmem:[%s1 + $0x28] sm:$0xff]
  %v55 = vld [vmem:[%s1 + $0x30] sm:$0xff]
  %v56 = vld [vmem:[%s1 + $0x38] sm:$0xff]
  %v57 = vld [vmem:[%s1 + $0x40] sm:$0xff]
  %v58 = vld [vmem:[%s1 + $0x48] sm:$0xff]
  %v59 = vld [vmem:[%s1 + $0x50] sm:$0xff]
  %v60 = vld [vmem:[%s1 + $0x58] sm:$0xff]
  %v61 = vld [vmem:[%s1 + $0x60] sm:$0xff]
  %v62 = vld [vmem:[%s1 + $0x68] sm:$0xff]
  %v63 = vld [vmem:[%s1 + $0x70] sm:$0xff]
  %v64 = vld [vmem:[%s1 + $0x78] sm:$0xff]
  %65 = vmatprep.subr.mxu0 0.0
  %66 = vmatpush1.msra.mxu0 %v49
  %67 = vmatprep.subr.mxu0 0.0
  %68 = vmatpush1.msra.mxu0 %v50
  %69 = vmatprep.subr.mxu0 0.0
  %70 = vmatpush1.msra.mxu0 %v51
  %71 = vmatprep.subr.mxu0 0.0
  %72 = vmatpush1.msra.mxu0 %v52
  %73 = vmatprep.subr.mxu0 0.0
  %74 = vmatpush1.msra.mxu0 %v53
  %75 = vmatprep.subr.mxu0 0.0
  %76 = vmatpush1.msra.mxu0 %v54
  %77 = vmatprep.subr.mxu0 0.0
  %78 = vmatpush1.msra.mxu0 %v55
  %79 = vmatprep.subr.mxu0 0.0
  %80 = vmatpush1.msra.mxu0 %v56
  %81 = vmatprep.subr.mxu0 0.0
  %82 = vmatpush1.msra.mxu0 %v57
  %83 = vmatprep.subr.mxu0 0.0
  %84 = vmatpush1.msra.mxu0 %v58
  %85 = vmatprep.subr.mxu0 0.0
  %86 = vmatpush1.msra.mxu0 %v59
  %87 = vmatprep.subr.mxu0 0.0
  %88 = vmatpush1.msra.mxu0 %v60
  %89 = vmatprep.subr.mxu0 0.0
  %90 = vmatpush1.msra.mxu0 %v61
  %91 = vmatprep.subr.mxu0 0.0
  %92 = vmatpush1.msra.mxu0 %v62
  %93 = vmatprep.subr.mxu0 0.0
  %94 = vmatpush1.msra.mxu0 %v63
  %95 = vmatprep.subr.mxu0 0.0
  %96 = vmatpush1.msra.mxu0 %v64
  %97 = vmatprep.subr.mxu0 0.0
  %98 = vmatpush1.msra.mxu0 0.0
  %99 = vmatprep.subr.mxu0 0.0
  %100 = vmatpush1.msra.mxu0 0.0
  %101 = vmatprep.subr.mxu0 0.0
  %102 = vmatpush1.msra.mxu0 0.0
  %103 = vmatprep.subr.mxu0 0.0
  %104 = vmatpush1.msra.mxu0 0.0
  %105 = vmatprep.subr.mxu0 0.0
  %106 = vmatpush1.msra.mxu0 0.0
  %107 = vmatprep.subr.mxu0 0.0
  %108 = vmatpush1.msra.mxu0 0.0
  %109 = vmatprep.subr.mxu0 0.0
  %110 = vmatpush1.msra.mxu0 0.0
  %111 = vmatprep.subr.mxu0 0.0
  %112 = vmatpush1.msra.mxu0 0.0
  %113 = vmatprep.subr.mxu0 0.0
  %114 = vmatpush1.msra.mxu0 0.0
  %115 = vmatprep.subr.mxu0 0.0
  %116 = vmatpush1.msra.mxu0 0.0
  %117 = vmatprep.subr.mxu0 0.0
  %118 = vmatpush1.msra.mxu0 0.0
  %119 = vmatprep.subr.mxu0 0.0
  %120 = vmatpush1.msra.mxu0 0.0
  %121 = vmatprep.subr.mxu0 0.0
  %122 = vmatpush1.msra.mxu0 0.0
  %123 = vmatprep.subr.mxu0 0.0
  %124 = vmatpush1.msra.mxu0 0.0
  %125 = vmatprep.subr.mxu0 0.0
  %126 = vmatpush1.msra.mxu0 0.0
  %127 = vmatprep.subr.mxu0 0.0
  %128 = vmatpush1.msra.mxu0 0.0
  %129 = vmatprep.mubr.f32.mxu0 0.0
  %130 = vmatmul.mubr.f32.gmra.mrb[0].mxu0 %v33
  %v131 = vpop.f32.mrb[0].mxu0
  %v132 = vadd.f32 0.0, %v131
  %v133 = vpop.f32.mrb[0].mxu0
  %134 = vmatprep.mubr.f32.mxu0 0.0
  %135 = vmatmul.mubr.f32.gmra.mrb[0].mxu0 %v34
  %v136 = vpop.f32.mrb[0].mxu0
  %v137 = vadd.f32 0.0, %v136
  %v138 = vpop.f32.mrb[0].mxu0
  %139 = vmatprep.mubr.f32.mxu0 0.0
  %140 = vmatmul.mubr.f32.gmra.mrb[0].mxu0 %v35
  %v141 = vpop.f32.mrb[0].mxu0
  %v142 = vadd.f32 0.0, %v141
  %v143 = vpop.f32.mrb[0].mxu0
  %144 = vmatprep.mubr.f32.mxu0 0.0
  %145 = vmatmul.mubr.f32.gmra.mrb[0].mxu0 %v36
  %v146 = vpop.f32.mrb[0].mxu0
  %v147 = vadd.f32 0.0, %v146
  %v148 = vpop.f32.mrb[0].mxu0
  %149 = vmatprep.mubr.f32.mxu0 0.0
  %150 = vmatmul.mubr.f32.gmra.mrb[0].mxu0 %v37
  %v151 = vpop.f32.mrb[0].mxu0
  %v152 = vadd.f32 0.0, %v151
  %v153 = vpop.f32.mrb[0].mxu0
  %154 = vmatprep.mubr.f32.mxu0 0.0
  %155 = vmatmul.mubr.f32.gmra.mrb[0].mxu0 %v38
  %v156 = vpop.f32.mrb[0].mxu0
  %v157 = vadd.f32 0.0, %v156
  %v158 = vpop.f32.mrb[0].mxu0
  %159 = vmatprep.mubr.f32.mxu0 0.0
  %160 = vmatmul.mubr.f32.gmra.mrb[0].mxu0 %v39
  %v161 = vpop.f32.mrb[0].mxu0
  %v162 = vadd.f32 0.0, %v161
  %v163 = vpop.f32.mrb[0].mxu0
  %164 = vmatprep.mubr.f32.mxu0 0.0
  %165 = vmatmul.mubr.f32.gmra.mrb[0].mxu0 %v40
  %v166 = vpop.f32.mrb[0].mxu0
  %v167 = vadd.f32 0.0, %v166
  %v168 = vpop.f32.mrb[0].mxu0
  %169 = vmatprep.mubr.f32.mxu0 0.0
  %170 = vmatmul.mubr.f32.gmra.mrb[0].mxu0 %v41
  %v171 = vpop.f32.mrb[0].mxu0
  %v172 = vadd.f32 0.0, %v171
  %v173 = vpop.f32.mrb[0].mxu0
  %174 = vmatprep.mubr.f32.mxu0 0.0
  %175 = vmatmul.mubr.f32.gmra.mrb[0].mxu0 %v42
  %v176 = vpop.f32.mrb[0].mxu0
  %v177 = vadd.f32 0.0, %v176
  %v178 = vpop.f32.mrb[0].mxu0
  %179 = vmatprep.mubr.f32.mxu0 0.0
  %180 = vmatmul.mubr.f32.gmra.mrb[0].mxu0 %v43
  %v181 = vpop.f32.mrb[0].mxu0
  %v182 = vadd.f32 0.0, %v181
  %v183 = vpop.f32.mrb[0].mxu0
  %184 = vmatprep.mubr.f32.mxu0 0.0
  %185 = vmatmul.mubr.f32.gmra.mrb[0].mxu0 %v44
  %v186 = vpop.f32.mrb[0].mxu0
  %v187 = vadd.f32 0.0, %v186
  %v188 = vpop.f32.mrb[0].mxu0
  %189 = vmatprep.mubr.f32.mxu0 0.0
  %190 = vmatmul.mubr.f32.gmra.mrb[0].mxu0 %v45
  %v191 = vpop.f32.mrb[0].mxu0
  %v192 = vadd.f32 0.0, %v191
  %v193 = vpop.f32.mrb[0].mxu0
  %194 = vmatprep.mubr.f32.mxu0 0.0
  %195 = vmatmul.mubr.f32.gmra.mrb[0].mxu0 %v46
  %v196 = vpop.f32.mrb[0].mxu0
  %v197 = vadd.f32 0.0, %v196
  %v198 = vpop.f32.mrb[0].mxu0
  %199 = vmatprep.mubr.f32.mxu0 0.0
  %200 = vmatmul.mubr.f32.gmra.mrb[0].mxu0 %v47
  %v201 = vpop.f32.mrb[0].mxu0
  %v202 = vadd.f32 0.0, %v201
  %v203 = vpop.f32.mrb[0].mxu0
  %204 = vmatprep.mubr.f32.mxu0 0.0
  %205 = vmatmul.mubr.f32.gmra.mrb[0].mxu0 %v48
  %v206 = vpop.f32.mrb[0].mxu0
  %v207 = vadd.f32 0.0, %v206
  %v208 = vpop.f32.mrb[0].mxu0
  %209 = vdwg.mxu0
  %v210 = vld [vmem:[%s2] sm:$0xff]
  %v211 = vld [vmem:[%s2 + $0x8] sm:$0xff]
  %v212 = vld [vmem:[%s2 + $0x10] sm:$0xff]
  %v213 = vld [vmem:[%s2 + $0x18] sm:$0xff]
  %v214 = vld [vmem:[%s2 + $0x20] sm:$0xff]
  %v215 = vld [vmem:[%s2 + $0x28] sm:$0xff]
  %v216 = vld [vmem:[%s2 + $0x30] sm:$0xff]
  %v217 = vld [vmem:[%s2 + $0x38] sm:$0xff]
  %v218 = vld [vmem:[%s2 + $0x40] sm:$0xff]
  %v219 = vld [vmem:[%s2 + $0x48] sm:$0xff]
  %v220 = vld [vmem:[%s2 + $0x50] sm:$0xff]
  %v221 = vld [vmem:[%s2 + $0x58] sm:$0xff]
  %v222 = vld [vmem:[%s2 + $0x60] sm:$0xff]
  %v223 = vld [vmem:[%s2 + $0x68] sm:$0xff]
  %v224 = vld [vmem:[%s2 + $0x70] sm:$0xff]
  %v225 = vld [vmem:[%s2 + $0x78] sm:$0xff]
  %227 = vset.pattern.permute.xlu0 0
  %228 = vperm.xlu0 %227, %v210
  %v229 = vpop.permute.xlu0 %228
  %232 = vset.pattern.permute.xlu0 0
  %233 = vperm.xlu0 %232, %v211
  %v234 = vpop.permute.xlu0 %233
  %237 = vset.pattern.permute.xlu0 0
  %238 = vperm.xlu0 %237, %v212
  %v239 = vpop.permute.xlu0 %238
  %242 = vset.pattern.permute.xlu0 0
  %243 = vperm.xlu0 %242, %v213
  %v244 = vpop.permute.xlu0 %243
  %247 = vset.pattern.permute.xlu0 0
  %248 = vperm.xlu0 %247, %v214
  %v249 = vpop.permute.xlu0 %248
  %252 = vset.pattern.permute.xlu0 0
  %253 = vperm.xlu0 %252, %v215
  %v254 = vpop.permute.xlu0 %253
  %257 = vset.pattern.permute.xlu0 0
  %258 = vperm.xlu0 %257, %v216
  %v259 = vpop.permute.xlu0 %258
  %262 = vset.pattern.permute.xlu0 0
  %263 = vperm.xlu0 %262, %v217
  %v264 = vpop.permute.xlu0 %263
  %267 = vset.pattern.permute.xlu0 0
  %268 = vperm.xlu0 %267, %v218
  %v269 = vpop.permute.xlu0 %268
  %272 = vset.pattern.permute.xlu0 0
  %273 = vperm.xlu0 %272, %v219
  %v274 = vpop.permute.xlu0 %273
  %277 = vset.pattern.permute.xlu0 0
  %278 = vperm.xlu0 %277, %v220
  %v279 = vpop.permute.xlu0 %278
  %282 = vset.pattern.permute.xlu0 0
  %283 = vperm.xlu0 %282, %v221
  %v284 = vpop.permute.xlu0 %283
  %287 = vset.pattern.permute.xlu0 0
  %288 = vperm.xlu0 %287, %v222
  %v289 = vpop.permute.xlu0 %288
  %292 = vset.pattern.permute.xlu0 0
  %293 = vperm.xlu0 %292, %v223
  %v294 = vpop.permute.xlu0 %293
  %297 = vset.pattern.permute.xlu0 0
  %298 = vperm.xlu0 %297, %v224
  %v299 = vpop.permute.xlu0 %298
  %302 = vset.pattern.permute.xlu0 0
  %303 = vperm.xlu0 %302, %v225
  %v304 = vpop.permute.xlu0 %303
  %v306 = vmul.f32 %v229, %v132
  %v307 = vmul.f32 %v234, %v137
  %v308 = vmul.f32 %v239, %v142
  %v309 = vmul.f32 %v244, %v147
  %v310 = vmul.f32 %v249, %v152
  %v311 = vmul.f32 %v254, %v157
  %v312 = vmul.f32 %v259, %v162
  %v313 = vmul.f32 %v264, %v167
  %v314 = vmul.f32 %v269, %v172
  %v315 = vmul.f32 %v274, %v177
  %v316 = vmul.f32 %v279, %v182
  %v317 = vmul.f32 %v284, %v187
  %v318 = vmul.f32 %v289, %v192
  %v319 = vmul.f32 %v294, %v197
  %v320 = vmul.f32 %v299, %v202
  %v321 = vmul.f32 %v304, %v207
  %v322 = vld [vmem:[%s3] sm:$0x1]
  %v324 = vlaneseq
  %v325 = vshrl.u32 %v324, 7
  %v326 = vsub.s32 0, %v325
  %v327 = vrot.slane %v322, %v326
  %v329 = vadd.f32 %v306, %v327
  %v330 = vadd.f32 %v307, %v327
  %v331 = vadd.f32 %v308, %v327
  %v332 = vadd.f32 %v309, %v327
  %v333 = vadd.f32 %v310, %v327
  %v334 = vadd.f32 %v311, %v327
  %v335 = vadd.f32 %v312, %v327
  %v336 = vadd.f32 %v313, %v327
  %v337 = vadd.f32 %v314, %v327
  %v338 = vadd.f32 %v315, %v327
  %v339 = vadd.f32 %v316, %v327
  %v340 = vadd.f32 %v317, %v327
  %v341 = vadd.f32 %v318, %v327
  %v342 = vadd.f32 %v319, %v327
  %v343 = vadd.f32 %v320, %v327
  %v344 = vadd.f32 %v321, %v327
  %345 = vst [vmem:[%s4] sm:$0xff] %v329
  %346 = vst [vmem:[%s4 + $0x8] sm:$0xff] %v330
  %347 = vst [vmem:[%s4 + $0x10] sm:$0xff] %v331
  %348 = vst [vmem:[%s4 + $0x18] sm:$0xff] %v332
  %349 = vst [vmem:[%s4 + $0x20] sm:$0xff] %v333
  %350 = vst [vmem:[%s4 + $0x28] sm:$0xff] %v334
  %351 = vst [vmem:[%s4 + $0x30] sm:$0xff] %v335
  %352 = vst [vmem:[%s4 + $0x38] sm:$0xff] %v336
  %353 = vst [vmem:[%s4 + $0x40] sm:$0xff] %v337
  %354 = vst [vmem:[%s4 + $0x48] sm:$0xff] %v338
  %355 = vst [vmem:[%s4 + $0x50] sm:$0xff] %v339
  %356 = vst [vmem:[%s4 + $0x58] sm:$0xff] %v340
  %357 = vst [vmem:[%s4 + $0x60] sm:$0xff] %v341
  %358 = vst [vmem:[%s4 + $0x68] sm:$0xff] %v342
  %359 = vst [vmem:[%s4 + $0x70] sm:$0xff] %v343
  %360 = vst [vmem:[%s4 + $0x78] sm:$0xff] %v344
  // Predicated region
  $region18: #{sgc_2_paper_forward.7} parent=0 // pred_check
    _
  $region19: #{sgc_2_paper_forward.7} parent=0 // pred_check_branch
    %362 = sbr.rel (0) target = $region21
  $region20: #{sgc_2_paper_forward.7} parent=0 // pred_region
    _
  $region21: #{sgc_2_paper_forward.7} parent=0 // pred_fallthru
    _
  // Predicated region
  $region22: #{sgc_2_paper_forward.7} parent=0 // pred_check
    _
  $region23: #{sgc_2_paper_forward.7} parent=0 // pred_check_branch
    %364 = sbr.rel (0) target = $region25
  $region24: #{sgc_2_paper_forward.7} parent=0 // pred_region
    _
  $region25: #{sgc_2_paper_forward.7} parent=0 // pred_fallthru
    _

// kernel: sgc_2_paper_forward.5
$region0: #{sgc_2_paper_forward.5}
  #allocation0 [shape = 'u32[]', space=smem, size = 0x4, offset = 0x4, fixed_abs, tag = 'smem constant byte address 0x4 - core index']
  #allocation1 [shape = 'u32[144,128]{1,0:T(1,128)}', space=vmem, size = 0x12000, scoped, tag = 'internal scratch']
  %s0 = inlined_call_operand.vmem [shape: bf16[128,128], index: 0, kind: input, shape index: {}]
  %s1 = inlined_call_operand.vmem [shape: f32[128,128], index: 1, kind: input, shape index: {}]
  %s2 = inlined_call_operand.vmem [shape: f32[128,1], index: 2, kind: input, shape index: {}]
  %s3 = inlined_call_operand.vmem [shape: f32[1,128], index: 3, kind: input, shape index: {}]
  %s4 = inlined_call_operand.vmem [shape: f32[128,128], index: 4, kind: output, shape index: {}]
  %s5 = sld [smem:[#allocation0]]
  $region26: #{sgc_2_paper_forward.5} parent=0
    _
  %s7 = ssub.s32 1, %s5
  %s8 = scalar_select 0, %s7, %s5
  // Predicated region
  $region2: #{sgc_2_paper_forward.5} parent=0 // pred_check
    _
  $region3: #{sgc_2_paper_forward.5} parent=0 // pred_check_branch
    %10 = sbr.rel (0) target = $region5
  $region4: #{sgc_2_paper_forward.5} parent=0 // pred_region
    _
  $region5: #{sgc_2_paper_forward.5} parent=0 // pred_fallthru
    _
  // Predicated region
  $region6: #{sgc_2_paper_forward.5} parent=0 // pred_check
    _
  $region7: #{sgc_2_paper_forward.5} parent=0 // pred_check_branch
    %12 = sbr.rel (0) target = $region9
  $region8: #{sgc_2_paper_forward.5} parent=0 // pred_region
    _
  $region9: #{sgc_2_paper_forward.5} parent=0 // pred_fallthru
    _
  // Predicated region
  $region10: #{sgc_2_paper_forward.5} parent=0 // pred_check
    _
  $region11: #{sgc_2_paper_forward.5} parent=0 // pred_check_branch
    %14 = sbr.rel (0) target = $region13
  $region12: #{sgc_2_paper_forward.5} parent=0 // pred_region
    _
  $region13: #{sgc_2_paper_forward.5} parent=0 // pred_fallthru
    _
  // Predicated region
  $region14: #{sgc_2_paper_forward.5} parent=0 // pred_check
    _
  $region15: #{sgc_2_paper_forward.5} parent=0 // pred_check_branch
    %16 = sbr.rel (0) target = $region17
  $region16: #{sgc_2_paper_forward.5} parent=0 // pred_region
    _
  $region17: #{sgc_2_paper_forward.5} parent=0 // pred_fallthru
    _
  %v17 = vld [vmem:[%s0] sm:$0xf]
  %v18 = vld [vmem:[%s0 + $0x4] sm:$0xf]
  %v19 = vld [vmem:[%s0 + $0x8] sm:$0xf]
  %v20 = vld [vmem:[%s0 + $0xc] sm:$0xf]
  %v21 = vld [vmem:[%s0 + $0x10] sm:$0xf]
  %v22 = vld [vmem:[%s0 + $0x14] sm:$0xf]
  %v23 = vld [vmem:[%s0 + $0x18] sm:$0xf]
  %v24 = vld [vmem:[%s0 + $0x1c] sm:$0xf]
  %v25 = vld [vmem:[%s0 + $0x20] sm:$0xf]
  %v26 = vld [vmem:[%s0 + $0x24] sm:$0xf]
  %v27 = vld [vmem:[%s0 + $0x28] sm:$0xf]
  %v28 = vld [vmem:[%s0 + $0x2c] sm:$0xf]
  %v29 = vld [vmem:[%s0 + $0x30] sm:$0xf]
  %v30 = vld [vmem:[%s0 + $0x34] sm:$0xf]
  %v31 = vld [vmem:[%s0 + $0x38] sm:$0xf]
  %v32 = vld [vmem:[%s0 + $0x3c] sm:$0xf]
  %v33 = vunpack.c.l.bf16 %v17
  %v34 = vunpack.c.l.bf16 %v18
  %v35 = vunpack.c.l.bf16 %v19
  %v36 = vunpack.c.l.bf16 %v20
  %v37 = vunpack.c.l.bf16 %v21
  %v38 = vunpack.c.l.bf16 %v22
  %v39 = vunpack.c.l.bf16 %v23
  %v40 = vunpack.c.l.bf16 %v24
  %v41 = vunpack.c.l.bf16 %v25
  %v42 = vunpack.c.l.bf16 %v26
  %v43 = vunpack.c.l.bf16 %v27
  %v44 = vunpack.c.l.bf16 %v28
  %v45 = vunpack.c.l.bf16 %v29
  %v46 = vunpack.c.l.bf16 %v30
  %v47 = vunpack.c.l.bf16 %v31
  %v48 = vunpack.c.l.bf16 %v32
  %v49 = vld [vmem:[%s1] sm:$0xff]
  %v50 = vld [vmem:[%s1 + $0x8] sm:$0xff]
  %v51 = vld [vmem:[%s1 + $0x10] sm:$0xff]
  %v52 = vld [vmem:[%s1 + $0x18] sm:$0xff]
  %v53 = vld [vmem:[%s1 + $0x20] sm:$0xff]
  %v54 = vld [vmem:[%s1 + $0x28] sm:$0xff]
  %v55 = vld [vmem:[%s1 + $0x30] sm:$0xff]
  %v56 = vld [vmem:[%s1 + $0x38] sm:$0xff]
  %v57 = vld [vmem:[%s1 + $0x40] sm:$0xff]
  %v58 = vld [vmem:[%s1 + $0x48] sm:$0xff]
  %v59 = vld [vmem:[%s1 + $0x50] sm:$0xff]
  %v60 = vld [vmem:[%s1 + $0x58] sm:$0xff]
  %v61 = vld [vmem:[%s1 + $0x60] sm:$0xff]
  %v62 = vld [vmem:[%s1 + $0x68] sm:$0xff]
  %v63 = vld [vmem:[%s1 + $0x70] sm:$0xff]
  %v64 = vld [vmem:[%s1 + $0x78] sm:$0xff]
  %65 = vmatprep.subr.mxu0 0.0
  %66 = vmatpush1.msra.mxu0 %v49
  %67 = vmatprep.subr.mxu0 0.0
  %68 = vmatpush1.msra.mxu0 %v50
  %69 = vmatprep.subr.mxu0 0.0
  %70 = vmatpush1.msra.mxu0 %v51
  %71 = vmatprep.subr.mxu0 0.0
  %72 = vmatpush1.msra.mxu0 %v52
  %73 = vmatprep.subr.mxu0 0.0
  %74 = vmatpush1.msra.mxu0 %v53
  %75 = vmatprep.subr.mxu0 0.0
  %76 = vmatpush1.msra.mxu0 %v54
  %77 = vmatprep.subr.mxu0 0.0
  %78 = vmatpush1.msra.mxu0 %v55
  %79 = vmatprep.subr.mxu0 0.0
  %80 = vmatpush1.msra.mxu0 %v56
  %81 = vmatprep.subr.mxu0 0.0
  %82 = vmatpush1.msra.mxu0 %v57
  %83 = vmatprep.subr.mxu0 0.0
  %84 = vmatpush1.msra.mxu0 %v58
  %85 = vmatprep.subr.mxu0 0.0
  %86 = vmatpush1.msra.mxu0 %v59
  %87 = vmatprep.subr.mxu0 0.0
  %88 = vmatpush1.msra.mxu0 %v60
  %89 = vmatprep.subr.mxu0 0.0
  %90 = vmatpush1.msra.mxu0 %v61
  %91 = vmatprep.subr.mxu0 0.0
  %92 = vmatpush1.msra.mxu0 %v62
  %93 = vmatprep.subr.mxu0 0.0
  %94 = vmatpush1.msra.mxu0 %v63
  %95 = vmatprep.subr.mxu0 0.0
  %96 = vmatpush1.msra.mxu0 %v64
  %97 = vmatprep.subr.mxu0 0.0
  %98 = vmatpush1.msra.mxu0 0.0
  %99 = vmatprep.subr.mxu0 0.0
  %100 = vmatpush1.msra.mxu0 0.0
  %101 = vmatprep.subr.mxu0 0.0
  %102 = vmatpush1.msra.mxu0 0.0
  %103 = vmatprep.subr.mxu0 0.0
  %104 = vmatpush1.msra.mxu0 0.0
  %105 = vmatprep.subr.mxu0 0.0
  %106 = vmatpush1.msra.mxu0 0.0
  %107 = vmatprep.subr.mxu0 0.0
  %108 = vmatpush1.msra.mxu0 0.0
  %109 = vmatprep.subr.mxu0 0.0
  %110 = vmatpush1.msra.mxu0 0.0
  %111 = vmatprep.subr.mxu0 0.0
  %112 = vmatpush1.msra.mxu0 0.0
  %113 = vmatprep.subr.mxu0 0.0
  %114 = vmatpush1.msra.mxu0 0.0
  %115 = vmatprep.subr.mxu0 0.0
  %116 = vmatpush1.msra.mxu0 0.0
  %117 = vmatprep.subr.mxu0 0.0
  %118 = vmatpush1.msra.mxu0 0.0
  %119 = vmatprep.subr.mxu0 0.0
  %120 = vmatpush1.msra.mxu0 0.0
  %121 = vmatprep.subr.mxu0 0.0
  %122 = vmatpush1.msra.mxu0 0.0
  %123 = vmatprep.subr.mxu0 0.0
  %124 = vmatpush1.msra.mxu0 0.0
  %125 = vmatprep.subr.mxu0 0.0
  %126 = vmatpush1.msra.mxu0 0.0
  %127 = vmatprep.subr.mxu0 0.0
  %128 = vmatpush1.msra.mxu0 0.0
  %129 = vmatprep.mubr.f32.mxu0 0.0
  %130 = vmatmul.mubr.f32.gmra.mrb[0].mxu0 %v33
  %v131 = vpop.f32.mrb[0].mxu0
  %v132 = vadd.f32 0.0, %v131
  %v133 = vpop.f32.mrb[0].mxu0
  %134 = vmatprep.mubr.f32.mxu0 0.0
  %135 = vmatmul.mubr.f32.gmra.mrb[0].mxu0 %v34
  %v136 = vpop.f32.mrb[0].mxu0
  %v137 = vadd.f32 0.0, %v136
  %v138 = vpop.f32.mrb[0].mxu0
  %139 = vmatprep.mubr.f32.mxu0 0.0
  %140 = vmatmul.mubr.f32.gmra.mrb[0].mxu0 %v35
  %v141 = vpop.f32.mrb[0].mxu0
  %v142 = vadd.f32 0.0, %v141
  %v143 = vpop.f32.mrb[0].mxu0
  %144 = vmatprep.mubr.f32.mxu0 0.0
  %145 = vmatmul.mubr.f32.gmra.mrb[0].mxu0 %v36
  %v146 = vpop.f32.mrb[0].mxu0
  %v147 = vadd.f32 0.0, %v146
  %v148 = vpop.f32.mrb[0].mxu0
  %149 = vmatprep.mubr.f32.mxu0 0.0
  %150 = vmatmul.mubr.f32.gmra.mrb[0].mxu0 %v37
  %v151 = vpop.f32.mrb[0].mxu0
  %v152 = vadd.f32 0.0, %v151
  %v153 = vpop.f32.mrb[0].mxu0
  %154 = vmatprep.mubr.f32.mxu0 0.0
  %155 = vmatmul.mubr.f32.gmra.mrb[0].mxu0 %v38
  %v156 = vpop.f32.mrb[0].mxu0
  %v157 = vadd.f32 0.0, %v156
  %v158 = vpop.f32.mrb[0].mxu0
  %159 = vmatprep.mubr.f32.mxu0 0.0
  %160 = vmatmul.mubr.f32.gmra.mrb[0].mxu0 %v39
  %v161 = vpop.f32.mrb[0].mxu0
  %v162 = vadd.f32 0.0, %v161
  %v163 = vpop.f32.mrb[0].mxu0
  %164 = vmatprep.mubr.f32.mxu0 0.0
  %165 = vmatmul.mubr.f32.gmra.mrb[0].mxu0 %v40
  %v166 = vpop.f32.mrb[0].mxu0
  %v167 = vadd.f32 0.0, %v166
  %v168 = vpop.f32.mrb[0].mxu0
  %169 = vmatprep.mubr.f32.mxu0 0.0
  %170 = vmatmul.mubr.f32.gmra.mrb[0].mxu0 %v41
  %v171 = vpop.f32.mrb[0].mxu0
  %v172 = vadd.f32 0.0, %v171
  %v173 = vpop.f32.mrb[0].mxu0
  %174 = vmatprep.mubr.f32.mxu0 0.0
  %175 = vmatmul.mubr.f32.gmra.mrb[0].mxu0 %v42
  %v176 = vpop.f32.mrb[0].mxu0
  %v177 = vadd.f32 0.0, %v176
  %v178 = vpop.f32.mrb[0].mxu0
  %179 = vmatprep.mubr.f32.mxu0 0.0
  %180 = vmatmul.mubr.f32.gmra.mrb[0].mxu0 %v43
  %v181 = vpop.f32.mrb[0].mxu0
  %v182 = vadd.f32 0.0, %v181
  %v183 = vpop.f32.mrb[0].mxu0
  %184 = vmatprep.mubr.f32.mxu0 0.0
  %185 = vmatmul.mubr.f32.gmra.mrb[0].mxu0 %v44
  %v186 = vpop.f32.mrb[0].mxu0
  %v187 = vadd.f32 0.0, %v186
  %v188 = vpop.f32.mrb[0].mxu0
  %189 = vmatprep.mubr.f32.mxu0 0.0
  %190 = vmatmul.mubr.f32.gmra.mrb[0].mxu0 %v45
  %v191 = vpop.f32.mrb[0].mxu0
  %v192 = vadd.f32 0.0, %v191
  %v193 = vpop.f32.mrb[0].mxu0
  %194 = vmatprep.mubr.f32.mxu0 0.0
  %195 = vmatmul.mubr.f32.gmra.mrb[0].mxu0 %v46
  %v196 = vpop.f32.mrb[0].mxu0
  %v197 = vadd.f32 0.0, %v196
  %v198 = vpop.f32.mrb[0].mxu0
  %199 = vmatprep.mubr.f32.mxu0 0.0
  %200 = vmatmul.mubr.f32.gmra.mrb[0].mxu0 %v47
  %v201 = vpop.f32.mrb[0].mxu0
  %v202 = vadd.f32 0.0, %v201
  %v203 = vpop.f32.mrb[0].mxu0
  %204 = vmatprep.mubr.f32.mxu0 0.0
  %205 = vmatmul.mubr.f32.gmra.mrb[0].mxu0 %v48
  %v206 = vpop.f32.mrb[0].mxu0
  %v207 = vadd.f32 0.0, %v206
  %v208 = vpop.f32.mrb[0].mxu0
  %209 = vdwg.mxu0
  %v210 = vld [vmem:[%s2] sm:$0xff]
  %v211 = vld [vmem:[%s2 + $0x8] sm:$0xff]
  %v212 = vld [vmem:[%s2 + $0x10] sm:$0xff]
  %v213 = vld [vmem:[%s2 + $0x18] sm:$0xff]
  %v214 = vld [vmem:[%s2 + $0x20] sm:$0xff]
  %v215 = vld [vmem:[%s2 + $0x28] sm:$0xff]
  %v216 = vld [vmem:[%s2 + $0x30] sm:$0xff]
  %v217 = vld [vmem:[%s2 + $0x38] sm:$0xff]
  %v218 = vld [vmem:[%s2 + $0x40] sm:$0xff]
  %v219 = vld [vmem:[%s2 + $0x48] sm:$0xff]
  %v220 = vld [vmem:[%s2 + $0x50] sm:$0xff]
  %v221 = vld [vmem:[%s2 + $0x58] sm:$0xff]
  %v222 = vld [vmem:[%s2 + $0x60] sm:$0xff]
  %v223 = vld [vmem:[%s2 + $0x68] sm:$0xff]
  %v224 = vld [vmem:[%s2 + $0x70] sm:$0xff]
  %v225 = vld [vmem:[%s2 + $0x78] sm:$0xff]
  %227 = vset.pattern.permute.xlu0 0
  %228 = vperm.xlu0 %227, %v210
  %v229 = vpop.permute.xlu0 %228
  %232 = vset.pattern.permute.xlu0 0
  %233 = vperm.xlu0 %232, %v211
  %v234 = vpop.permute.xlu0 %233
  %237 = vset.pattern.permute.xlu0 0
  %238 = vperm.xlu0 %237, %v212
  %v239 = vpop.permute.xlu0 %238
  %242 = vset.pattern.permute.xlu0 0
  %243 = vperm.xlu0 %242, %v213
  %v244 = vpop.permute.xlu0 %243
  %247 = vset.pattern.permute.xlu0 0
  %248 = vperm.xlu0 %247, %v214
  %v249 = vpop.permute.xlu0 %248
  %252 = vset.pattern.permute.xlu0 0
  %253 = vperm.xlu0 %252, %v215
  %v254 = vpop.permute.xlu0 %253
  %257 = vset.pattern.permute.xlu0 0
  %258 = vperm.xlu0 %257, %v216
  %v259 = vpop.permute.xlu0 %258
  %262 = vset.pattern.permute.xlu0 0
  %263 = vperm.xlu0 %262, %v217
  %v264 = vpop.permute.xlu0 %263
  %267 = vset.pattern.permute.xlu0 0
  %268 = vperm.xlu0 %267, %v218
  %v269 = vpop.permute.xlu0 %268
  %272 = vset.pattern.permute.xlu0 0
  %273 = vperm.xlu0 %272, %v219
  %v274 = vpop.permute.xlu0 %273
  %277 = vset.pattern.permute.xlu0 0
  %278 = vperm.xlu0 %277, %v220
  %v279 = vpop.permute.xlu0 %278
  %282 = vset.pattern.permute.xlu0 0
  %283 = vperm.xlu0 %282, %v221
  %v284 = vpop.permute.xlu0 %283
  %287 = vset.pattern.permute.xlu0 0
  %288 = vperm.xlu0 %287, %v222
  %v289 = vpop.permute.xlu0 %288
  %292 = vset.pattern.permute.xlu0 0
  %293 = vperm.xlu0 %292, %v223
  %v294 = vpop.permute.xlu0 %293
  %297 = vset.pattern.permute.xlu0 0
  %298 = vperm.xlu0 %297, %v224
  %v299 = vpop.permute.xlu0 %298
  %302 = vset.pattern.permute.xlu0 0
  %303 = vperm.xlu0 %302, %v225
  %v304 = vpop.permute.xlu0 %303
  %v306 = vmul.f32 %v229, %v132
  %v307 = vmul.f32 %v234, %v137
  %v308 = vmul.f32 %v239, %v142
  %v309 = vmul.f32 %v244, %v147
  %v310 = vmul.f32 %v249, %v152
  %v311 = vmul.f32 %v254, %v157
  %v312 = vmul.f32 %v259, %v162
  %v313 = vmul.f32 %v264, %v167
  %v314 = vmul.f32 %v269, %v172
  %v315 = vmul.f32 %v274, %v177
  %v316 = vmul.f32 %v279, %v182
  %v317 = vmul.f32 %v284, %v187
  %v318 = vmul.f32 %v289, %v192
  %v319 = vmul.f32 %v294, %v197
  %v320 = vmul.f32 %v299, %v202
  %v321 = vmul.f32 %v304, %v207
  %322 = vst [vmem:[%s4] sm:$0xff] %v306
  %323 = vst [vmem:[%s4 + $0x8] sm:$0xff] %v307
  %324 = vst [vmem:[%s4 + $0x10] sm:$0xff] %v308
  %325 = vst [vmem:[%s4 + $0x18] sm:$0xff] %v309
  %326 = vst [vmem:[%s4 + $0x20] sm:$0xff] %v310
  %327 = vst [vmem:[%s4 + $0x28] sm:$0xff] %v311
  %328 = vst [vmem:[%s4 + $0x30] sm:$0xff] %v312
  %329 = vst [vmem:[%s4 + $0x38] sm:$0xff] %v313
  %330 = vst [vmem:[%s4 + $0x40] sm:$0xff] %v314
  %331 = vst [vmem:[%s4 + $0x48] sm:$0xff] %v315
  %332 = vst [vmem:[%s4 + $0x50] sm:$0xff] %v316
  %333 = vst [vmem:[%s4 + $0x58] sm:$0xff] %v317
  %334 = vst [vmem:[%s4 + $0x60] sm:$0xff] %v318
  %335 = vst [vmem:[%s4 + $0x68] sm:$0xff] %v319
  %336 = vst [vmem:[%s4 + $0x70] sm:$0xff] %v320
  %337 = vst [vmem:[%s4 + $0x78] sm:$0xff] %v321
  // Predicated region
  $region18: #{sgc_2_paper_forward.5} parent=0 // pred_check
    _
  $region19: #{sgc_2_paper_forward.5} parent=0 // pred_check_branch
    %339 = sbr.rel (0) target = $region21
  $region20: #{sgc_2_paper_forward.5} parent=0 // pred_region
    _
  $region21: #{sgc_2_paper_forward.5} parent=0 // pred_fallthru
    _
  // Predicated region
  $region22: #{sgc_2_paper_forward.5} parent=0 // pred_check
    _
  $region23: #{sgc_2_paper_forward.5} parent=0 // pred_check_branch
    %341 = sbr.rel (0) target = $region25
  $region24: #{sgc_2_paper_forward.5} parent=0 // pred_region
    _
  $region25: #{sgc_2_paper_forward.5} parent=0 // pred_fallthru
    _

// kernel: sgc_2_paper_forward.4
$region0: #{sgc_2_paper_forward.4}
  #allocation0 [shape = 'u32[]', space=smem, size = 0x4, offset = 0x4, fixed_abs, tag = 'smem constant byte address 0x4 - core index']
  #allocation1 [shape = 'u32[144,128]{1,0:T(1,128)}', space=vmem, size = 0x12000, scoped, tag = 'internal scratch']
  %s0 = inlined_call_operand.vmem [shape: f32[128,32], index: 0, kind: input, shape index: {}]
  %s1 = inlined_call_operand.vmem [shape: f32[32,128], index: 1, kind: input, shape index: {}]
  %s2 = inlined_call_operand.vmem [shape: f32[128,1], index: 2, kind: input, shape index: {}]
  %s3 = inlined_call_operand.vmem [shape: f32[128,128], index: 3, kind: output, shape index: {}]
  %s4 = sld [smem:[#allocation0]]
  $region22: #{sgc_2_paper_forward.4} parent=0
    _
  %s6 = ssub.s32 1, %s4
  %s7 = scalar_select 0, %s6, %s4
  // Predicated region
  $region2: #{sgc_2_paper_forward.4} parent=0 // pred_check
    _
  $region3: #{sgc_2_paper_forward.4} parent=0 // pred_check_branch
    %9 = sbr.rel (0) target = $region5
  $region4: #{sgc_2_paper_forward.4} parent=0 // pred_region
    _
  $region5: #{sgc_2_paper_forward.4} parent=0 // pred_fallthru
    _
  // Predicated region
  $region6: #{sgc_2_paper_forward.4} parent=0 // pred_check
    _
  $region7: #{sgc_2_paper_forward.4} parent=0 // pred_check_branch
    %11 = sbr.rel (0) target = $region9
  $region8: #{sgc_2_paper_forward.4} parent=0 // pred_region
    _
  $region9: #{sgc_2_paper_forward.4} parent=0 // pred_fallthru
    _
  // Predicated region
  $region10: #{sgc_2_paper_forward.4} parent=0 // pred_check
    _
  $region11: #{sgc_2_paper_forward.4} parent=0 // pred_check_branch
    %13 = sbr.rel (0) target = $region13
  $region12: #{sgc_2_paper_forward.4} parent=0 // pred_region
    _
  $region13: #{sgc_2_paper_forward.4} parent=0 // pred_fallthru
    _
  %v14 = vld [vmem:[%s0] sm:$0xff]
  %v15 = vld [vmem:[%s0 + $0x8] sm:$0xff]
  %v16 = vld [vmem:[%s0 + $0x10] sm:$0xff]
  %v17 = vld [vmem:[%s0 + $0x18] sm:$0xff]
  %v18 = vld [vmem:[%s0 + $0x20] sm:$0xff]
  %v19 = vld [vmem:[%s0 + $0x28] sm:$0xff]
  %v20 = vld [vmem:[%s0 + $0x30] sm:$0xff]
  %v21 = vld [vmem:[%s0 + $0x38] sm:$0xff]
  %v22 = vld [vmem:[%s0 + $0x40] sm:$0xff]
  %v23 = vld [vmem:[%s0 + $0x48] sm:$0xff]
  %v24 = vld [vmem:[%s0 + $0x50] sm:$0xff]
  %v25 = vld [vmem:[%s0 + $0x58] sm:$0xff]
  %v26 = vld [vmem:[%s0 + $0x60] sm:$0xff]
  %v27 = vld [vmem:[%s0 + $0x68] sm:$0xff]
  %v28 = vld [vmem:[%s0 + $0x70] sm:$0xff]
  %v29 = vld [vmem:[%s0 + $0x78] sm:$0xff]
  %v30 = vld [vmem:[%s1] sm:$0xff]
  %v31 = vld [vmem:[%s1 + $0x8] sm:$0xff]
  %v32 = vld [vmem:[%s1 + $0x10] sm:$0xff]
  %v33 = vld [vmem:[%s1 + $0x18] sm:$0xff]
  %vm34 = vcmask 261120
  %v36 = vsel %vm34, %v14, 0
  %v39 = vsel %vm34, %v15, 0
  %v42 = vsel %vm34, %v16, 0
  %v45 = vsel %vm34, %v17, 0
  %v48 = vsel %vm34, %v18, 0
  %v51 = vsel %vm34, %v19, 0
  %v54 = vsel %vm34, %v20, 0
  %v57 = vsel %vm34, %v21, 0
  %v60 = vsel %vm34, %v22, 0
  %v63 = vsel %vm34, %v23, 0
  %v66 = vsel %vm34, %v24, 0
  %v69 = vsel %vm34, %v25, 0
  %v72 = vsel %vm34, %v26, 0
  %v75 = vsel %vm34, %v27, 0
  %v78 = vsel %vm34, %v28, 0
  %v81 = vsel %vm34, %v29, 0
  %83 = vmatprep.subr.mxu0 0.0
  %84 = vmatpush1.msra.mxu0 %v30
  %85 = vmatprep.subr.mxu0 0.0
  %86 = vmatpush1.msra.mxu0 %v31
  %87 = vmatprep.subr.mxu0 0.0
  %88 = vmatpush1.msra.mxu0 %v32
  %89 = vmatprep.subr.mxu0 0.0
  %90 = vmatpush1.msra.mxu0 %v33
  %91 = vmatprep.subr.mxu0 0.0
  %92 = vmatpush1.msra.mxu0 0.0
  %93 = vmatprep.subr.mxu0 0.0
  %94 = vmatpush1.msra.mxu0 0.0
  %95 = vmatprep.subr.mxu0 0.0
  %96 = vmatpush1.msra.mxu0 0.0
  %97 = vmatprep.subr.mxu0 0.0
  %98 = vmatpush1.msra.mxu0 0.0
  %99 = vmatprep.subr.mxu0 0.0
  %100 = vmatpush1.msra.mxu0 0.0
  %101 = vmatprep.subr.mxu0 0.0
  %102 = vmatpush1.msra.mxu0 0.0
  %103 = vmatprep.subr.mxu0 0.0
  %104 = vmatpush1.msra.mxu0 0.0
  %105 = vmatprep.subr.mxu0 0.0
  %106 = vmatpush1.msra.mxu0 0.0
  %107 = vmatprep.subr.mxu0 0.0
  %108 = vmatpush1.msra.mxu0 0.0
  %109 = vmatprep.subr.mxu0 0.0
  %110 = vmatpush1.msra.mxu0 0.0
  %111 = vmatprep.subr.mxu0 0.0
  %112 = vmatpush1.msra.mxu0 0.0
  %113 = vmatprep.subr.mxu0 0.0
  %114 = vmatpush1.msra.mxu0 0.0
  %115 = vmatprep.subr.mxu0 0.0
  %116 = vmatpush1.msra.mxu0 0.0
  %117 = vmatprep.subr.mxu0 0.0
  %118 = vmatpush1.msra.mxu0 0.0
  %119 = vmatprep.subr.mxu0 0.0
  %120 = vmatpush1.msra.mxu0 0.0
  %121 = vmatprep.subr.mxu0 0.0
  %122 = vmatpush1.msra.mxu0 0.0
  %123 = vmatprep.subr.mxu0 0.0
  %124 = vmatpush1.msra.mxu0 0.0
  %125 = vmatprep.subr.mxu0 0.0
  %126 = vmatpush1.msra.mxu0 0.0
  %127 = vmatprep.subr.mxu0 0.0
  %128 = vmatpush1.msra.mxu0 0.0
  %129 = vmatprep.subr.mxu0 0.0
  %130 = vmatpush1.msra.mxu0 0.0
  %131 = vmatprep.subr.mxu0 0.0
  %132 = vmatpush1.msra.mxu0 0.0
  %133 = vmatprep.subr.mxu0 0.0
  %134 = vmatpush1.msra.mxu0 0.0
  %135 = vmatprep.subr.mxu0 0.0
  %136 = vmatpush1.msra.mxu0 0.0
  %137 = vmatprep.subr.mxu0 0.0
  %138 = vmatpush1.msra.mxu0 0.0
  %139 = vmatprep.subr.mxu0 0.0
  %140 = vmatpush1.msra.mxu0 0.0
  %141 = vmatprep.subr.mxu0 0.0
  %142 = vmatpush1.msra.mxu0 0.0
  %143 = vmatprep.subr.mxu0 0.0
  %144 = vmatpush1.msra.mxu0 0.0
  %145 = vmatprep.subr.mxu0 0.0
  %146 = vmatpush1.msra.mxu0 0.0
  %147 = vmatprep.mubr.f32.mxu0 0.0
  %148 = vmatmul.mubr.f32.gmra.mrb[0].mxu0 %v36
  %v149 = vpop.f32.mrb[0].mxu0
  %v150 = vadd.f32 0.0, %v149
  %v151 = vpop.f32.mrb[0].mxu0
  %152 = vmatprep.mubr.f32.mxu0 0.0
  %153 = vmatmul.mubr.f32.gmra.mrb[0].mxu0 %v39
  %v154 = vpop.f32.mrb[0].mxu0
  %v155 = vadd.f32 0.0, %v154
  %v156 = vpop.f32.mrb[0].mxu0
  %157 = vmatprep.mubr.f32.mxu0 0.0
  %158 = vmatmul.mubr.f32.gmra.mrb[0].mxu0 %v42
  %v159 = vpop.f32.mrb[0].mxu0
  %v160 = vadd.f32 0.0, %v159
  %v161 = vpop.f32.mrb[0].mxu0
  %162 = vmatprep.mubr.f32.mxu0 0.0
  %163 = vmatmul.mubr.f32.gmra.mrb[0].mxu0 %v45
  %v164 = vpop.f32.mrb[0].mxu0
  %v165 = vadd.f32 0.0, %v164
  %v166 = vpop.f32.mrb[0].mxu0
  %167 = vmatprep.mubr.f32.mxu0 0.0
  %168 = vmatmul.mubr.f32.gmra.mrb[0].mxu0 %v48
  %v169 = vpop.f32.mrb[0].mxu0
  %v170 = vadd.f32 0.0, %v169
  %v171 = vpop.f32.mrb[0].mxu0
  %172 = vmatprep.mubr.f32.mxu0 0.0
  %173 = vmatmul.mubr.f32.gmra.mrb[0].mxu0 %v51
  %v174 = vpop.f32.mrb[0].mxu0
  %v175 = vadd.f32 0.0, %v174
  %v176 = vpop.f32.mrb[0].mxu0
  %177 = vmatprep.mubr.f32.mxu0 0.0
  %178 = vmatmul.mubr.f32.gmra.mrb[0].mxu0 %v54
  %v179 = vpop.f32.mrb[0].mxu0
  %v180 = vadd.f32 0.0, %v179
  %v181 = vpop.f32.mrb[0].mxu0
  %182 = vmatprep.mubr.f32.mxu0 0.0
  %183 = vmatmul.mubr.f32.gmra.mrb[0].mxu0 %v57
  %v184 = vpop.f32.mrb[0].mxu0
  %v185 = vadd.f32 0.0, %v184
  %v186 = vpop.f32.mrb[0].mxu0
  %187 = vmatprep.mubr.f32.mxu0 0.0
  %188 = vmatmul.mubr.f32.gmra.mrb[0].mxu0 %v60
  %v189 = vpop.f32.mrb[0].mxu0
  %v190 = vadd.f32 0.0, %v189
  %v191 = vpop.f32.mrb[0].mxu0
  %192 = vmatprep.mubr.f32.mxu0 0.0
  %193 = vmatmul.mubr.f32.gmra.mrb[0].mxu0 %v63
  %v194 = vpop.f32.mrb[0].mxu0
  %v195 = vadd.f32 0.0, %v194
  %v196 = vpop.f32.mrb[0].mxu0
  %197 = vmatprep.mubr.f32.mxu0 0.0
  %198 = vmatmul.mubr.f32.gmra.mrb[0].mxu0 %v66
  %v199 = vpop.f32.mrb[0].mxu0
  %v200 = vadd.f32 0.0, %v199
  %v201 = vpop.f32.mrb[0].mxu0
  %202 = vmatprep.mubr.f32.mxu0 0.0
  %203 = vmatmul.mubr.f32.gmra.mrb[0].mxu0 %v69
  %v204 = vpop.f32.mrb[0].mxu0
  %v205 = vadd.f32 0.0, %v204
  %v206 = vpop.f32.mrb[0].mxu0
  %207 = vmatprep.mubr.f32.mxu0 0.0
  %208 = vmatmul.mubr.f32.gmra.mrb[0].mxu0 %v72
  %v209 = vpop.f32.mrb[0].mxu0
  %v210 = vadd.f32 0.0, %v209
  %v211 = vpop.f32.mrb[0].mxu0
  %212 = vmatprep.mubr.f32.mxu0 0.0
  %213 = vmatmul.mubr.f32.gmra.mrb[0].mxu0 %v75
  %v214 = vpop.f32.mrb[0].mxu0
  %v215 = vadd.f32 0.0, %v214
  %v216 = vpop.f32.mrb[0].mxu0
  %217 = vmatprep.mubr.f32.mxu0 0.0
  %218 = vmatmul.mubr.f32.gmra.mrb[0].mxu0 %v78
  %v219 = vpop.f32.mrb[0].mxu0
  %v220 = vadd.f32 0.0, %v219
  %v221 = vpop.f32.mrb[0].mxu0
  %222 = vmatprep.mubr.f32.mxu0 0.0
  %223 = vmatmul.mubr.f32.gmra.mrb[0].mxu0 %v81
  %v224 = vpop.f32.mrb[0].mxu0
  %v225 = vadd.f32 0.0, %v224
  %v226 = vpop.f32.mrb[0].mxu0
  %227 = vdwg.mxu0
  %v228 = vld [vmem:[%s2] sm:$0xff]
  %v229 = vld [vmem:[%s2 + $0x8] sm:$0xff]
  %v230 = vld [vmem:[%s2 + $0x10] sm:$0xff]
  %v231 = vld [vmem:[%s2 + $0x18] sm:$0xff]
  %v232 = vld [vmem:[%s2 + $0x20] sm:$0xff]
  %v233 = vld [vmem:[%s2 + $0x28] sm:$0xff]
  %v234 = vld [vmem:[%s2 + $0x30] sm:$0xff]
  %v235 = vld [vmem:[%s2 + $0x38] sm:$0xff]
  %v236 = vld [vmem:[%s2 + $0x40] sm:$0xff]
  %v237 = vld [vmem:[%s2 + $0x48] sm:$0xff]
  %v238 = vld [vmem:[%s2 + $0x50] sm:$0xff]
  %v239 = vld [vmem:[%s2 + $0x58] sm:$0xff]
  %v240 = vld [vmem:[%s2 + $0x60] sm:$0xff]
  %v241 = vld [vmem:[%s2 + $0x68] sm:$0xff]
  %v242 = vld [vmem:[%s2 + $0x70] sm:$0xff]
  %v243 = vld [vmem:[%s2 + $0x78] sm:$0xff]
  %245 = vset.pattern.permute.xlu0 0
  %246 = vperm.xlu0 %245, %v228
  %v247 = vpop.permute.xlu0 %246
  %250 = vset.pattern.permute.xlu0 0
  %251 = vperm.xlu0 %250, %v229
  %v252 = vpop.permute.xlu0 %251
  %255 = vset.pattern.permute.xlu0 0
  %256 = vperm.xlu0 %255, %v230
  %v257 = vpop.permute.xlu0 %256
  %260 = vset.pattern.permute.xlu0 0
  %261 = vperm.xlu0 %260, %v231
  %v262 = vpop.permute.xlu0 %261
  %265 = vset.pattern.permute.xlu0 0
  %266 = vperm.xlu0 %265, %v232
  %v267 = vpop.permute.xlu0 %266
  %270 = vset.pattern.permute.xlu0 0
  %271 = vperm.xlu0 %270, %v233
  %v272 = vpop.permute.xlu0 %271
  %275 = vset.pattern.permute.xlu0 0
  %276 = vperm.xlu0 %275, %v234
  %v277 = vpop.permute.xlu0 %276
  %280 = vset.pattern.permute.xlu0 0
  %281 = vperm.xlu0 %280, %v235
  %v282 = vpop.permute.xlu0 %281
  %285 = vset.pattern.permute.xlu0 0
  %286 = vperm.xlu0 %285, %v236
  %v287 = vpop.permute.xlu0 %286
  %290 = vset.pattern.permute.xlu0 0
  %291 = vperm.xlu0 %290, %v237
  %v292 = vpop.permute.xlu0 %291
  %295 = vset.pattern.permute.xlu0 0
  %296 = vperm.xlu0 %295, %v238
  %v297 = vpop.permute.xlu0 %296
  %300 = vset.pattern.permute.xlu0 0
  %301 = vperm.xlu0 %300, %v239
  %v302 = vpop.permute.xlu0 %301
  %305 = vset.pattern.permute.xlu0 0
  %306 = vperm.xlu0 %305, %v240
  %v307 = vpop.permute.xlu0 %306
  %310 = vset.pattern.permute.xlu0 0
  %311 = vperm.xlu0 %310, %v241
  %v312 = vpop.permute.xlu0 %311
  %315 = vset.pattern.permute.xlu0 0
  %316 = vperm.xlu0 %315, %v242
  %v317 = vpop.permute.xlu0 %316
  %320 = vset.pattern.permute.xlu0 0
  %321 = vperm.xlu0 %320, %v243
  %v322 = vpop.permute.xlu0 %321
  %v324 = vmul.f32 %v247, %v150
  %v325 = vmul.f32 %v252, %v155
  %v326 = vmul.f32 %v257, %v160
  %v327 = vmul.f32 %v262, %v165
  %v328 = vmul.f32 %v267, %v170
  %v329 = vmul.f32 %v272, %v175
  %v330 = vmul.f32 %v277, %v180
  %v331 = vmul.f32 %v282, %v185
  %v332 = vmul.f32 %v287, %v190
  %v333 = vmul.f32 %v292, %v195
  %v334 = vmul.f32 %v297, %v200
  %v335 = vmul.f32 %v302, %v205
  %v336 = vmul.f32 %v307, %v210
  %v337 = vmul.f32 %v312, %v215
  %v338 = vmul.f32 %v317, %v220
  %v339 = vmul.f32 %v322, %v225
  %340 = vst [vmem:[%s3] sm:$0xff] %v324
  %341 = vst [vmem:[%s3 + $0x8] sm:$0xff] %v325
  %342 = vst [vmem:[%s3 + $0x10] sm:$0xff] %v326
  %343 = vst [vmem:[%s3 + $0x18] sm:$0xff] %v327
  %344 = vst [vmem:[%s3 + $0x20] sm:$0xff] %v328
  %345 = vst [vmem:[%s3 + $0x28] sm:$0xff] %v329
  %346 = vst [vmem:[%s3 + $0x30] sm:$0xff] %v330
  %347 = vst [vmem:[%s3 + $0x38] sm:$0xff] %v331
  %348 = vst [vmem:[%s3 + $0x40] sm:$0xff] %v332
  %349 = vst [vmem:[%s3 + $0x48] sm:$0xff] %v333
  %350 = vst [vmem:[%s3 + $0x50] sm:$0xff] %v334
  %351 = vst [vmem:[%s3 + $0x58] sm:$0xff] %v335
  %352 = vst [vmem:[%s3 + $0x60] sm:$0xff] %v336
  %353 = vst [vmem:[%s3 + $0x68] sm:$0xff] %v337
  %354 = vst [vmem:[%s3 + $0x70] sm:$0xff] %v338
  %355 = vst [vmem:[%s3 + $0x78] sm:$0xff] %v339
  // Predicated region
  $region14: #{sgc_2_paper_forward.4} parent=0 // pred_check
    _
  $region15: #{sgc_2_paper_forward.4} parent=0 // pred_check_branch
    %357 = sbr.rel (0) target = $region17
  $region16: #{sgc_2_paper_forward.4} parent=0 // pred_region
    _
  $region17: #{sgc_2_paper_forward.4} parent=0 // pred_fallthru
    _
  // Predicated region
  $region18: #{sgc_2_paper_forward.4} parent=0 // pred_check
    _
  $region19: #{sgc_2_paper_forward.4} parent=0 // pred_check_branch
    %359 = sbr.rel (0) target = $region21
  $region20: #{sgc_2_paper_forward.4} parent=0 // pred_region
    _
  $region21: #{sgc_2_paper_forward.4} parent=0 // pred_fallthru
    _

</llo_original>
